<compile_context>
chip_gen: v5e
topology: v5e:2x2
jax: 0.10.0
libtpu: 0.0.40
codegen_flags: <defaults>
</compile_context>

<pallas_src>
import math

import jax
import jax.numpy as jnp
from jax.experimental import pallas as pl
from jax.experimental.pallas import tpu as pltpu


def _conv_rmsnorm_kernel(x_ref, g_ref, o_ref):
    # x_ref/o_ref: (bb, C, T) native dtype   g_ref: (C, 1) f32 == gamma * sqrt(C)
    x = x_ref[...].astype(jnp.float32)                        # (bb, C, T)
    ssq = jnp.sum(x * x, axis=1, keepdims=True)               # (bb, 1, T) channel sum-sq
    # rsqrt goes to the EUP slot; clamping ssq at eps^2 matches F.normalize's
    # max(norm, 1e-12) clamp for all real activations.
    inv = jax.lax.rsqrt(jnp.maximum(ssq, jnp.float32(1e-24)))
    # g_ref (C, 1) broadcasts as (1, C, 1) against (bb, C, T).
    o_ref[...] = (x * inv * g_ref[...]).astype(o_ref.dtype)


def _pick_tiles(n, c, hw, itemsize, target_bytes=2 * 1024 * 1024):
    """Choose (batch_block, spatial_tile) so one block is ~target_bytes.

    Spatial tile is a multiple of 128 (lane-dense); if the whole spatial
    extent fits in one tile, fold batch elements into the block instead so
    tiny layers don't pay one grid step per batch element.
    """
    t = (target_bytes // max(1, c * itemsize)) // 128 * 128
    t = max(128, t)
    if t < hw:
        return 1, t
    bb = max(1, min(n, target_bytes // max(1, c * hw * itemsize)))
    return bb, hw  # full-extent spatial block is always layout-legal


def conv_rmsnorm(x_nchw: jax.Array, gamma: jax.Array, *, spatial_tile=None) -> jax.Array:
    """ConvRMSNorm over the channel dim of an NCHW tensor (Pallas kernel)."""
    n, c, h, w = x_nchw.shape
    hw = h * w
    # Keep native dtype end-to-end: no full-tensor f32 materialization.
    x3 = x_nchw.reshape(n, c, hw)
    # Fold the * sqrt(dim) factor into gamma once, outside the kernel.
    g2 = (gamma.astype(jnp.float32) * jnp.float32(math.sqrt(c))).reshape(c, 1)

    if spatial_tile is not None:
        bb, t = 1, spatial_tile
    else:
        bb, t = _pick_tiles(n, c, hw, x3.dtype.itemsize)
    grid = (pl.cdiv(n, bb), pl.cdiv(hw, t))

    # TODO(synk): for C < 8 the (C, T) tile pads channels to 8 sublanes; the op
    # stays HBM-bound so wall-clock is unaffected, but a channel-major vreg
    # layout would recover the wasted VPU lanes for very narrow layers.

    out = pl.pallas_call(
        _conv_rmsnorm_kernel,
        out_shape=jax.ShapeDtypeStruct((n, c, hw), x3.dtype),
        grid_spec=pltpu.PrefetchScalarGridSpec(
            num_scalar_prefetch=0,
            grid=grid,
            in_specs=[
                # NOTE: the channel axis must never be tiled — the in-kernel
                # reduction (and the sqrt(C) folded into gamma) assume full C.
                pl.BlockSpec((bb, c, t), lambda b, s: (b, 0, s)),
                pl.BlockSpec((c, 1), lambda b, s: (0, 0)),
            ],
            out_specs=pl.BlockSpec((bb, c, t), lambda b, s: (b, 0, s)),
        ),
        compiler_params=pltpu.CompilerParams(
            # Both axes independent: lets v7x shard blocks across its two
            # TensorCores even when N is 1-2 (common for diffusion UNets).
            dimension_semantics=("parallel", "parallel"),
        ),
        # Pre-norm activation is dead after this call; let the output reuse it.
        input_output_aliases={0: 0},
    )(x3, g2)

    return out.reshape(n, c, h, w)


class PreNorm:
    """JAX mirror of the PyTorch PreNorm module: fn(ConvRMSNorm(dim)(x))."""

    def __init__(self, dim, fn, gamma):
        self.fn = fn              # arbitrary callable; stays in plain JAX
        self.gamma = gamma        # (dim,) per-channel scale (nn.Parameter)

    def __call__(self, x, *args, **kwargs):
        x = conv_rmsnorm(x, self.gamma)
        # TODO(synk): `fn` is an arbitrary sub-module (attention/conv block);
        # it is applied here as a plain JAX callable, not fused into the kernel.
        return self.fn(x, *args, **kwargs)


def _reference(x, gamma):
    # pure-JAX reference for F.normalize(x, dim=1) * sqrt(C) * gamma
    c = x.shape[1]
    xf = x.astype(jnp.float32)
    norm = jnp.sqrt(jnp.sum(xf ** 2, axis=1, keepdims=True))
    denom = jnp.maximum(norm, 1e-12)
    return (xf / denom * math.sqrt(c) * gamma.reshape(1, c, 1, 1)).astype(x.dtype)


if __name__ == "__main__":
    key = jax.random.PRNGKey(0)
    kx, kg, kx2, kg2 = jax.random.split(key, 4)

    # --- primary check: module-consistent small shape (batch-folded block path)
    N, C, H, W = 2, 4, 16, 16
    x = jax.random.normal(kx, (N, C, H, W), dtype=jnp.float32)
    # nn.Parameter init is ones; perturb deterministically so the scale matters.
    gamma = jnp.ones((C,), jnp.float32) + 0.1 * jax.random.normal(kg, (C,), jnp.float32)
    ref = _reference(x, gamma)

    module = PreNorm(C, fn=lambda y: y, gamma=gamma)   # identity fn for the demo
    out = module(x)
    out = jax.block_until_ready(out)

    assert out.shape == (N, C, H, W)
    assert out.dtype == x.dtype
    assert jnp.allclose(out, ref, atol=1e-5, rtol=1e-5)

    # --- secondary check: bf16 input + forced spatial tiling (multi-block path)
    N2, C2, H2, W2 = 1, 8, 16, 16
    x2 = jax.random.normal(kx2, (N2, C2, H2, W2), dtype=jnp.bfloat16)
    gamma2 = jnp.ones((C2,), jnp.float32) + 0.1 * jax.random.normal(kg2, (C2,), jnp.float32)
    ref2 = _reference(x2, gamma2)
    out2 = jax.block_until_ready(conv_rmsnorm(x2, gamma2, spatial_tile=128))
    assert out2.shape == (N2, C2, H2, W2)
    assert out2.dtype == x2.dtype
    assert jnp.allclose(out2.astype(jnp.float32), ref2.astype(jnp.float32),
                        atol=2e-2, rtol=2e-2)

    print("KERNEL_OK")
</pallas_src>

<mosaic_0001>
module attributes {stable_mosaic.version = 11 : i64} {
  func.func @_conv_rmsnorm_kernel(%arg0: i32, %arg1: i32, %arg2: memref<2x4x256xf32, #tpu.memory_space<vmem>>, %arg3: memref<4x1xf32, #tpu.memory_space<vmem>>, %arg4: memref<2x4x256xf32, #tpu.memory_space<vmem>>) attributes {dimension_semantics = [#tpu.dimension_semantics<parallel>, #tpu.dimension_semantics<parallel>], iteration_bounds = array<i64: 1, 1>, scalar_prefetch = 0 : i64, scratch_operands = 0 : i64, tpu.core_type = #tpu.core_type<tc>, window_params = [{transform_indices = @transform_0, window_bounds = array<i64: 2, 4, 256>}, {pipeline_mode = #tpu.pipeline_mode<synchronous>, transform_indices = @transform_1, window_bounds = array<i64: 4, 1>}, {transform_indices = @transform_2, window_bounds = array<i64: 2, 4, 256>}]} {
    %c0 = arith.constant 0 : index
    %c0_0 = arith.constant 0 : index
    %c0_1 = arith.constant 0 : index
    %0 = vector.load %arg2[%c0, %c0_0, %c0_1] : memref<2x4x256xf32, #tpu.memory_space<vmem>>, vector<2x4x256xf32>
    %1 = arith.mulf %0, %0 : vector<2x4x256xf32>
    %cst = arith.constant dense<0.000000e+00> : vector<2x256xf32>
    %2 = vector.multi_reduction <add>, %1, %cst [1] : vector<2x4x256xf32> to vector<2x256xf32>
    %3 = vector.shape_cast %2 : vector<2x256xf32> to vector<2x1x256xf32>
    %cst_2 = arith.constant 1.000000e-24 : f32
    %4 = vector.broadcast %cst_2 : f32 to vector<2x1x256xf32>
    %5 = arith.maximumf %3, %4 : vector<2x1x256xf32>
    %6 = math.rsqrt %5 : vector<2x1x256xf32>
    %7 = vector.broadcast %6 : vector<2x1x256xf32> to vector<2x4x256xf32>
    %8 = arith.mulf %0, %7 : vector<2x4x256xf32>
    %c0_3 = arith.constant 0 : index
    %c0_4 = arith.constant 0 : index
    %9 = vector.load %arg3[%c0_3, %c0_4] : memref<4x1xf32, #tpu.memory_space<vmem>>, vector<4x1xf32>
    %10 = vector.shape_cast %9 : vector<4x1xf32> to vector<1x4x1xf32>
    %11 = vector.broadcast %10 : vector<1x4x1xf32> to vector<2x4x256xf32>
    %12 = arith.mulf %8, %11 : vector<2x4x256xf32>
    %c0_5 = arith.constant 0 : index
    %c0_6 = arith.constant 0 : index
    %c0_7 = arith.constant 0 : index
    %13 = vector.load %arg4[%c0_5, %c0_6, %c0_7] : memref<2x4x256xf32, #tpu.memory_space<vmem>>, vector<2x4x256xf32>
    tpu.vector_store %arg4[%c0_5, %c0_6, %c0_7], %12 {strides = array<i32>} : memref<2x4x256xf32, #tpu.memory_space<vmem>>, vector<2x4x256xf32>,
    return
  }
  func.func @transform_0(%arg0: i32, %arg1: i32) -> (i32, i32, i32) {
    %c0_i32 = arith.constant 0 : i32
    %c0_i32_0 = arith.constant 0 : i32
    return %arg0, %c0_i32, %arg1 : i32, i32, i32
  }
  func.func @transform_1(%arg0: i32, %arg1: i32) -> (i32, i32) {
    %c0_i32 = arith.constant 0 : i32
    %c0_i32_0 = arith.constant 0 : i32
    %c0_i32_1 = arith.constant 0 : i32
    return %c0_i32, %c0_i32_0 : i32, i32
  }
  func.func @transform_2(%arg0: i32, %arg1: i32) -> (i32, i32, i32) {
    %c0_i32 = arith.constant 0 : i32
    %c0_i32_0 = arith.constant 0 : i32
    return %arg0, %c0_i32, %arg1 : i32, i32, i32
  }
}

</mosaic_0001>

<llo_original>
// kernel: tpu_custom_call.1
$region0: #{tpu_custom_call.1}
  #allocation0 [shape = 'u32[]', space=smem, size = 0x4, offset = 0x4, fixed_abs, tag = 'smem constant byte address 0x4 - core index']
  #allocation1 [shape = 'u32[72,128]{1,0:T(1,128)}', space=vmem, size = 0x9000, scoped, tag = 'internal scratch']
  %s0 = inlined_call_operand.hbm [shape: f32[2,4,256], index: 0, kind: input, shape index: {}, may-alias: {0,2}]
  %s1 = inlined_call_operand.vmem [shape: f32[4,1], index: 1, kind: input, shape index: {}]
  %s2 = inlined_call_operand.hbm [shape: f32[2,4,256], index: 2, kind: output, shape index: {}, may-alias: {0,2}]
  %s3 = sld [smem:[#allocation0]]
  $region22: #{tpu_custom_call.1} parent=0
    _
  %s5 = ssub.s32 1, %s3
  %s6 = scalar_select 0, %s5, %s3
  $region1: #{tpu_custom_call.1} parent=0
    #allocation2 [shape = 'u8[8192]{0}', space=vmem, size = 0x2000, scoped, tag = 'input window, operand 0, single buffered']
    #allocation3 [shape = 's32[1]{0}', space=sflag, size = 0x4, scoped, tag = 'scoped memory for tpu_custom_call.1']
    #allocation4 [shape = 's32[1]{0}', space=sflag, size = 0x4, scoped, tag = 'scoped memory for tpu_custom_call.1']
    #allocation5 [shape = 'u8[8192]{0}', space=vmem, size = 0x2000, scoped, tag = 'output window, operand 0, single buffered']
    %7 = vsyncpa [#allocation3], 0
    %8 = vsyncpa [#allocation4], 0
    // Predicated region
    $region2: #{tpu_custom_call.1} parent=1 // pred_check
      _
    $region3: #{tpu_custom_call.1} parent=1 // pred_check_branch
      %10 = sbr.rel (0) target = $region5
    $region4: #{tpu_custom_call.1} parent=1 // pred_region
      %12 = vsyncadd [#allocation3], 0
      %s13 = sshll.u32 %s0, 4
      %s14 = int_to_ptr.hbm [resolvable:$true] %s13
      %s15 = sshll.u32 [#allocation2], 4
      %s16 = int_to_ptr.vmem [resolvable:$true] %s15
      %21 = dma.hbm_to_vmem [thread:$0]  %s14, 256, %s16, [#allocation3], 128, 128, 8
    $region5: #{tpu_custom_call.1} parent=1 // pred_fallthru
      _
    // Predicated region
    $region6: #{tpu_custom_call.1} parent=1 // pred_check
      _
    $region7: #{tpu_custom_call.1} parent=1 // pred_check_branch
      %23 = sbr.rel (0) target = $region9
    $region8: #{tpu_custom_call.1} parent=1 // pred_region
      _
    $region9: #{tpu_custom_call.1} parent=1 // pred_fallthru
      _
    // Predicated region
    $region10: #{tpu_custom_call.1} parent=1 // pred_check
      _
    $region11: #{tpu_custom_call.1} parent=1 // pred_check_branch
      %25 = sbr.rel (0) target = $region13
    $region12: #{tpu_custom_call.1} parent=1 // pred_region
      %27 = dma.done [#allocation3], 256
    $region13: #{tpu_custom_call.1} parent=1 // pred_fallthru
      _
    %v28 = vld [vmem:[#allocation2] sm:$0xff]
    %v29 = vld [vmem:[#allocation2 + $0x8] sm:$0xff]
    %v30 = vmul.f32 %v28, %v28
    %v31 = vmul.f32 %v29, %v29
    %34 = vst [vmem:[#allocation1] ss:$2 sm:$0xff] %v30
    %v35 = vld.sshfl [vmem:[#allocation1] sm:$0xff pattern:$0x75316420]
    %v36 = vld.sshfl [vmem:[#allocation1 + $0x8] sm:$0xff pattern:$0x75316420]
    %s37 = scalar_lea.vmem [#allocation1], 16
    %38 = vst [vmem:[%s37] ss:$2 sm:$0xff] %v31
    %v39 = vld.sshfl [vmem:[#allocation1 + $0x10] sm:$0xff pattern:$0x75316420]
    %v40 = vld.sshfl [vmem:[#allocation1 + $0x18] sm:$0xff pattern:$0x75316420]
    %vm45 = vcmask 1043456
    %v46 = vsel %vm45, %v35, 0.0
    %v47 = vrot.slane %v46, 4
    %v48 = vadd.f32 %v46, %v47
    %v49 = vrot.slane %v48, 2
    %v50 = vadd.f32 %v48, %v49
    %v51 = vrot.slane %v50, 1
    %v52 = vadd.f32 %v50, %v51
    %v53 = vsel %vm45, %v36, 0.0
    %v54 = vrot.slane %v53, 4
    %v55 = vadd.f32 %v53, %v54
    %v56 = vrot.slane %v55, 2
    %v57 = vadd.f32 %v55, %v56
    %v58 = vrot.slane %v57, 1
    %v59 = vadd.f32 %v57, %v58
    %v60 = vsel %vm45, %v39, 0.0
    %v61 = vrot.slane %v60, 4
    %v62 = vadd.f32 %v60, %v61
    %v63 = vrot.slane %v62, 2
    %v64 = vadd.f32 %v62, %v63
    %v65 = vrot.slane %v64, 1
    %v66 = vadd.f32 %v64, %v65
    %v67 = vsel %vm45, %v40, 0.0
    %v68 = vrot.slane %v67, 4
    %v69 = vadd.f32 %v67, %v68
    %v70 = vrot.slane %v69, 2
    %v71 = vadd.f32 %v69, %v70
    %v72 = vrot.slane %v71, 1
    %v73 = vadd.f32 %v71, %v72
    %v74 = vmax.f32 %v52, 1e-24
    %v75 = vmax.f32 %v59, 1e-24
    %v76 = vmax.f32 %v66, 1e-24
    %v77 = vmax.f32 %v73, 1e-24
    %v78 = vrsqrt.pop %v74
    %v79 = vmul.f32 %v78, %v74
    %v80 = vmul.f32 %v79, %v78
    %v81 = vmul.f32 0.5, %v80
    %v82 = vsub.f32 1.5, %v81
    %v83 = vmul.f32 %v78, %v82
    %vm84 = vweird.f32 %v74
    %vm85 = vweird.f32 %v78
    %vm86 = vmor %vm84, %vm85
    %v87 = vsel %vm86, %v78, %v83
    %v88 = vrsqrt.pop %v75
    %v89 = vmul.f32 %v88, %v75
    %v90 = vmul.f32 %v89, %v88
    %v91 = vmul.f32 0.5, %v90
    %v92 = vsub.f32 1.5, %v91
    %v93 = vmul.f32 %v88, %v92
    %vm94 = vweird.f32 %v75
    %vm95 = vweird.f32 %v88
    %vm96 = vmor %vm94, %vm95
    %v97 = vsel %vm96, %v88, %v93
    %v98 = vrsqrt.pop %v76
    %v99 = vmul.f32 %v98, %v76
    %v100 = vmul.f32 %v99, %v98
    %v101 = vmul.f32 0.5, %v100
    %v102 = vsub.f32 1.5, %v101
    %v103 = vmul.f32 %v98, %v102
    %vm104 = vweird.f32 %v76
    %vm105 = vweird.f32 %v98
    %vm106 = vmor %vm104, %vm105
    %v107 = vsel %vm106, %v98, %v103
    %v108 = vrsqrt.pop %v77
    %v109 = vmul.f32 %v108, %v77
    %v110 = vmul.f32 %v109, %v108
    %v111 = vmul.f32 0.5, %v110
    %v112 = vsub.f32 1.5, %v111
    %v113 = vmul.f32 %v108, %v112
    %vm114 = vweird.f32 %v77
    %vm115 = vweird.f32 %v108
    %vm116 = vmor %vm114, %vm115
    %v117 = vsel %vm116, %v108, %v113
    %v122 = vrot.slane %v97, 4
    %v123 = vrot.slane %v117, 4
    %v124 = vsel %vm45, %v87, %v122
    %v125 = vsel %vm45, %v107, %v123
    %v128 = vmul.f32 %v28, %v124
    %v129 = vmul.f32 %v29, %v125
    %v130 = vld [vmem:[%s1] sm:$0xf]
    %132 = vset.pattern.permute.xlu0 0
    %133 = vperm.xlu0 %132, %v130
    %v134 = vpop.permute.xlu0 %133
    %v136 = vunpack.c.l.s4 839922192
    %v137 = vunpack.c.0.s8 %v136
    %v138 = vperm.slane %v134, %v137
    %v140 = vmul.f32 %v128, %v138
    %v141 = vmul.f32 %v129, %v138
    %142 = vst [vmem:[#allocation5] sm:$0xff] %v140
    %143 = vst [vmem:[#allocation5 + $0x8] sm:$0xff] %v141
    // Predicated region
    $region14: #{tpu_custom_call.1} parent=1 // pred_check
      _
    $region15: #{tpu_custom_call.1} parent=1 // pred_check_branch
      %145 = sbr.rel (0) target = $region17
    $region16: #{tpu_custom_call.1} parent=1 // pred_region
      %147 = vsyncadd [#allocation4], 0
      %s148 = sshll.u32 [#allocation5], 4
      %s149 = int_to_ptr.vmem [resolvable:$true] %s148
      %s150 = sshll.u32 %s2, 4
      %s151 = int_to_ptr.hbm [resolvable:$true] %s150
      %156 = dma.vmem_to_hbm [thread:$0]  %s149, 256, %s151, [#allocation4], 128, 128, 8
    $region17: #{tpu_custom_call.1} parent=1 // pred_fallthru
      _
    // Predicated region
    $region18: #{tpu_custom_call.1} parent=1 // pred_check
      _
    $region19: #{tpu_custom_call.1} parent=1 // pred_check_branch
      %158 = sbr.rel (0) target = $region21
    $region20: #{tpu_custom_call.1} parent=1 // pred_region
      %160 = dma.done [#allocation4], 256
    $region21: #{tpu_custom_call.1} parent=1 // pred_fallthru
      _
    %161 = vsyncpa [#allocation3], 1
    %162 = vsyncpa [#allocation4], 1

</llo_original>
